<compile_context>
chip_gen: v5e
topology: v5e:2x2
jax: 0.10.0
libtpu: 0.0.40
codegen_flags: <defaults>
</compile_context>

<pallas_src>
import numpy as np
import jax
import jax.numpy as jnp
from jax.experimental import pallas as pl
from jax.experimental.pallas import tpu as pltpu

EMB = 256        # emb_size
ZDIM = 128       # z_dim
NCH = 10         # num_channel
K = 4            # conv kernel size == stride
T = 8            # conv output length (forced by fc in_features = num_channel * 8)
L = K * T        # input sequence length = 32
CT = NCH * T     # 80 (true conv-flatten width)
CT_PAD = 128     # padded to one full lane tile
HEADS = 2 * ZDIM # fused mu|logvar width = 256


def _round_up(x, m):
    return ((x + m - 1) // m) * m


def _cdiv(a, b):
    return (a + b - 1) // b


def _choose_block_b(bs, target=4096):
    """Batch tile: big enough to amortize per-step overhead, sized from the
    block count so padding waste stays small, even block count (>1) so both
    v7x TensorCores get work."""
    num_blocks = _cdiv(bs, target)
    if num_blocks > 1 and num_blocks % 2:
        num_blocks += 1
    return max(8, _round_up(_cdiv(bs, num_blocks), 8))


def _encoder_kernel(x_ref, m_ref, b0_ref, w_ref, b_ref, mu_ref, var_ref):
    # f32 -> bf16 cast in-kernel (hidden under MXU work).
    x = x_ref[...].astype(jnp.bfloat16)                                     # (bm, 32)
    # Conv1d(1, NCH, kernel=4, stride=4) + ReLU as one lane-padded matmul.
    h0 = jnp.dot(x, m_ref[...], preferred_element_type=jnp.float32) + b0_ref[...]
    h0 = jnp.maximum(h0, 0.0)                                               # (bm, 128)
    # fc -> [mu | logvar] collapsed offline into a single (128, 256) matmul.
    heads = jnp.dot(h0.astype(jnp.bfloat16), w_ref[...],
                    preferred_element_type=jnp.float32) + b_ref[...]        # (bm, 256)
    # Lane 128 is a vreg boundary: split is free; exp only touches the var half.
    mu_ref[...] = heads[:, :ZDIM].astype(mu_ref.dtype)
    var_ref[...] = jnp.exp(heads[:, ZDIM:]).astype(var_ref.dtype)


def time_function_encoder(pr, params, *, block_b=None, out_dtype=jnp.bfloat16):
    """Returns (mu, var) of the Normal distribution produced by forward()."""
    bs = pr.shape[0]
    if block_b is None:
        block_b = _choose_block_b(bs)
    block_b = max(8, _round_up(block_b, 8))
    bs_pad = _round_up(bs, block_b)

    x = pr
    if bs_pad != bs:
        x = jnp.pad(x, ((0, bs_pad - bs), (0, 0)))

    m, b0, w_fused, b_fused = params
    weight_bytes = sum(int(np.prod(a.shape)) * a.dtype.itemsize for a in params)
    out_bytes_per_row = 2 * ZDIM * jnp.dtype(out_dtype).itemsize

    def full(arr):
        nd = arr.ndim
        return pl.BlockSpec(arr.shape, lambda i, _nd=nd: (0,) * _nd)

    cost = pl.CostEstimate(
        flops=2 * bs_pad * (L * CT_PAD + CT_PAD * HEADS),
        transcendentals=bs_pad * ZDIM,
        bytes_accessed=bs_pad * (L * pr.dtype.itemsize + out_bytes_per_row)
                       + weight_bytes,
    )

    mu, var = pl.pallas_call(
        _encoder_kernel,
        out_shape=(jax.ShapeDtypeStruct((bs_pad, ZDIM), out_dtype),
                   jax.ShapeDtypeStruct((bs_pad, ZDIM), out_dtype)),
        grid=(bs_pad // block_b,),
        in_specs=[
            pl.BlockSpec((block_b, L), lambda i: (i, 0)),   # pr batch tile (f32)
            full(m), full(b0),
            full(w_fused), full(b_fused),
        ],
        out_specs=(pl.BlockSpec((block_b, ZDIM), lambda i: (i, 0)),
                   pl.BlockSpec((block_b, ZDIM), lambda i: (i, 0))),
        compiler_params=pltpu.CompilerParams(dimension_semantics=("parallel",)),
        cost_estimate=cost,
    )(x, m, b0, w_fused, b_fused)

    if bs_pad != bs:
        mu = mu[:bs]
        var = var[:bs]
    return mu, var


def init_params(key):
    """Deterministic synthetic parameters matching the PyTorch module shapes,
    plus the offline glue that lowers conv->matmul and folds fc@heads."""
    ks = jax.random.split(key, 8)
    scale = 0.05
    w_conv = scale * jax.random.normal(ks[0], (NCH, 1, K), jnp.float32)   # Conv1d weight
    b_conv = scale * jax.random.normal(ks[1], (NCH,), jnp.float32)
    w_fc = scale * jax.random.normal(ks[2], (EMB, CT), jnp.float32)       # Linear(80, 256)
    b_fc = scale * jax.random.normal(ks[3], (EMB,), jnp.float32)
    w_mu = scale * jax.random.normal(ks[4], (ZDIM, EMB), jnp.float32)     # Linear(256, 128)
    b_mu = scale * jax.random.normal(ks[5], (ZDIM,), jnp.float32)
    w_var = scale * jax.random.normal(ks[6], (ZDIM, EMB), jnp.float32)    # Linear(256, 128)
    b_var = scale * jax.random.normal(ks[7], (ZDIM,), jnp.float32)

    # --- conv (stride-4 / kernel-4 Conv1d) as an (L, CT_PAD) matrix -----------
    # conv_out[b, c, t] = sum_j w_conv[c, 0, j] * x[b, 4t + j] + b_conv[c]
    # flatten order (PyTorch .reshape(bs, -1)) is index c*T + t.
    # Columns CT..CT_PAD-1 are zero padding (matched by zero fc weight rows),
    # so results are identical to the 80-wide path.
    w_conv_np = np.asarray(w_conv)
    M = np.zeros((L, CT_PAD), dtype=np.float32)
    for t in range(T):
        for c in range(NCH):
            M[K * t:K * t + K, c * T + t] = w_conv_np[c, 0, :]
    b0_flat = np.zeros((CT_PAD,), dtype=np.float32)
    b0_flat[:CT] = np.repeat(np.asarray(b_conv), T)

    fcw_pad = np.zeros((CT_PAD, EMB), dtype=np.float32)                   # (128, 256)
    fcw_pad[:CT, :] = np.asarray(w_fc).T

    headw = np.concatenate([np.asarray(w_mu).T, np.asarray(w_var).T], axis=1)  # (256, 256)
    headb = np.concatenate([np.asarray(b_mu), np.asarray(b_var)], axis=0)      # (256,)

    # --- fold fc and the fused heads offline (f32) ----------------------------
    # heads = (relu_conv @ fcw_pad + b_fc) @ headw + headb
    #       = relu_conv @ (fcw_pad @ headw) + (b_fc @ headw + headb)
    w_fused = fcw_pad @ headw                                             # (128, 256)
    b_fused = np.asarray(b_fc)[None, :] @ headw + headb[None, :]          # (1, 256)

    params = (
        jnp.asarray(M, dtype=jnp.bfloat16),            # (32, 128)  bf16
        jnp.asarray(b0_flat)[None, :],                 # (1, 128)   f32
        jnp.asarray(w_fused, dtype=jnp.bfloat16),      # (128, 256) bf16
        jnp.asarray(b_fused),                          # (1, 256)   f32
    )
    raw = (w_conv, b_conv, w_fc, b_fc, w_mu, b_mu, w_var, b_var)
    return params, raw


def reference_forward(pr, raw):
    """Pure numpy mirror of the PyTorch forward (for validation, f32)."""
    w_conv, b_conv, w_fc, b_fc, w_mu, b_mu, w_var, b_var = [np.asarray(a) for a in raw]
    x = np.asarray(pr)
    bs = x.shape[0]
    conv = np.zeros((bs, NCH, T), dtype=np.float32)
    for t in range(T):
        conv[:, :, t] = x[:, K * t:K * t + K] @ w_conv[:, 0, :].T + b_conv
    conv = np.maximum(conv, 0.0).reshape(bs, -1)          # (bs, C*T), channel-major
    h = conv @ w_fc.T + b_fc
    mu = h @ w_mu.T + b_mu
    var = np.exp(h @ w_var.T + b_var)
    return mu, var


if __name__ == "__main__":
    key = jax.random.PRNGKey(0)
    k_x, k_p = jax.random.split(key)

    bs = 8
    pr = jax.random.normal(k_x, (bs, L), jnp.float32)      # (8, 32)

    params, raw = init_params(k_p)

    mu, var = time_function_encoder(pr, params)
    mu, var = jax.block_until_ready((mu, var))

    mu_ref, var_ref = reference_forward(pr, raw)
    # bf16 matmul operands, fused bf16 weights and bf16 outputs -> looser
    # tolerance than the f32 reference.
    np.testing.assert_allclose(np.asarray(mu).astype(np.float32), mu_ref,
                               rtol=3e-2, atol=3e-2)
    np.testing.assert_allclose(np.asarray(var).astype(np.float32), var_ref,
                               rtol=3e-2, atol=3e-2)

    print("KERNEL_OK")
</pallas_src>

<mosaic_0001>
module attributes {stable_mosaic.version = 11 : i64} {
  func.func @_encoder_kernel(%arg0: i32, %arg1: memref<8x32xf32, #tpu.memory_space<vmem>>, %arg2: memref<32x128xbf16, #tpu.memory_space<vmem>>, %arg3: memref<1x128xf32, #tpu.memory_space<vmem>>, %arg4: memref<128x256xbf16, #tpu.memory_space<vmem>>, %arg5: memref<1x256xf32, #tpu.memory_space<vmem>>, %arg6: memref<8x128xbf16, #tpu.memory_space<vmem>>, %arg7: memref<8x128xbf16, #tpu.memory_space<vmem>>) attributes {dimension_semantics = [#tpu.dimension_semantics<parallel>], iteration_bounds = array<i64: 1>, scalar_prefetch = 0 : i64, scratch_operands = 0 : i64, tpu.core_type = #tpu.core_type<tc>, window_params = [{transform_indices = @transform_0, window_bounds = array<i64: 8, 32>}, {pipeline_mode = #tpu.pipeline_mode<synchronous>, transform_indices = @transform_1, window_bounds = array<i64: 32, 128>}, {pipeline_mode = #tpu.pipeline_mode<synchronous>, transform_indices = @transform_2, window_bounds = array<i64: 1, 128>}, {pipeline_mode = #tpu.pipeline_mode<synchronous>, transform_indices = @transform_3, window_bounds = array<i64: 128, 256>}, {pipeline_mode = #tpu.pipeline_mode<synchronous>, transform_indices = @transform_4, window_bounds = array<i64: 1, 256>}, {transform_indices = @transform_5, window_bounds = array<i64: 8, 128>}, {transform_indices = @transform_6, window_bounds = array<i64: 8, 128>}]} {
    %c0 = arith.constant 0 : index
    %c0_0 = arith.constant 0 : index
    %0 = vector.load %arg1[%c0, %c0_0] : memref<8x32xf32, #tpu.memory_space<vmem>>, vector<8x32xf32>
    %1 = arith.truncf %0 : vector<8x32xf32> to vector<8x32xbf16>
    %c0_1 = arith.constant 0 : index
    %c0_2 = arith.constant 0 : index
    %2 = vector.load %arg2[%c0_1, %c0_2] : memref<32x128xbf16, #tpu.memory_space<vmem>>, vector<32x128xbf16>
    %cst = arith.constant dense<0.000000e+00> : vector<8x128xf32>
    %3 = tpu.matmul %1, %2, %cst {dimension_numbers = #tpu.dot_dimension_numbers<[1], [0], [0], [1], [0, 0, 1, 1], [], []>} : vector<8x32xbf16>, vector<32x128xbf16>, vector<8x128xf32> -> vector<8x128xf32>
    %c0_3 = arith.constant 0 : index
    %c0_4 = arith.constant 0 : index
    %4 = vector.load %arg3[%c0_3, %c0_4] : memref<1x128xf32, #tpu.memory_space<vmem>>, vector<1x128xf32>
    %5 = vector.broadcast %4 : vector<1x128xf32> to vector<8x128xf32>
    %6 = arith.addf %3, %5 : vector<8x128xf32>
    %cst_5 = arith.constant 0.000000e+00 : f32
    %7 = vector.broadcast %cst_5 : f32 to vector<8x128xf32>
    %8 = arith.maximumf %6, %7 : vector<8x128xf32>
    %9 = arith.truncf %8 : vector<8x128xf32> to vector<8x128xbf16>
    %c0_6 = arith.constant 0 : index
    %c0_7 = arith.constant 0 : index
    %10 = vector.load %arg4[%c0_6, %c0_7] : memref<128x256xbf16, #tpu.memory_space<vmem>>, vector<128x256xbf16>
    %cst_8 = arith.constant dense<0.000000e+00> : vector<8x256xf32>
    %11 = tpu.matmul %9, %10, %cst_8 {dimension_numbers = #tpu.dot_dimension_numbers<[1], [0], [0], [1], [0, 0, 1, 1], [], []>} : vector<8x128xbf16>, vector<128x256xbf16>, vector<8x256xf32> -> vector<8x256xf32>
    %c0_9 = arith.constant 0 : index
    %c0_10 = arith.constant 0 : index
    %12 = vector.load %arg5[%c0_9, %c0_10] : memref<1x256xf32, #tpu.memory_space<vmem>>, vector<1x256xf32>
    %13 = vector.broadcast %12 : vector<1x256xf32> to vector<8x256xf32>
    %14 = arith.addf %11, %13 : vector<8x256xf32>
    %15 = vector.extract_strided_slice %14 {offsets = [0, 0], sizes = [8, 128], strides = [1, 1]} : vector<8x256xf32> to vector<8x128xf32>
    %16 = arith.truncf %15 : vector<8x128xf32> to vector<8x128xbf16>
    %c0_11 = arith.constant 0 : index
    %c0_12 = arith.constant 0 : index
    %17 = vector.load %arg6[%c0_11, %c0_12] : memref<8x128xbf16, #tpu.memory_space<vmem>>, vector<8x128xbf16>
    tpu.vector_store %arg6[%c0_11, %c0_12], %16 {strides = array<i32>} : memref<8x128xbf16, #tpu.memory_space<vmem>>, vector<8x128xbf16>,
    %18 = vector.extract_strided_slice %14 {offsets = [0, 128], sizes = [8, 128], strides = [1, 1]} : vector<8x256xf32> to vector<8x128xf32>
    %19 = math.exp %18 : vector<8x128xf32>
    %20 = arith.truncf %19 : vector<8x128xf32> to vector<8x128xbf16>
    %c0_13 = arith.constant 0 : index
    %c0_14 = arith.constant 0 : index
    %21 = vector.load %arg7[%c0_13, %c0_14] : memref<8x128xbf16, #tpu.memory_space<vmem>>, vector<8x128xbf16>
    tpu.vector_store %arg7[%c0_13, %c0_14], %20 {strides = array<i32>} : memref<8x128xbf16, #tpu.memory_space<vmem>>, vector<8x128xbf16>,
    return
  }
  func.func @transform_0(%arg0: i32) -> (i32, i32) {
    %c0_i32 = arith.constant 0 : i32
    %c0_i32_0 = arith.constant 0 : i32
    return %arg0, %c0_i32 : i32, i32
  }
  func.func @transform_1(%arg0: i32) -> (i32, i32) {
    %c0_i32 = arith.constant 0 : i32
    %c0_i32_0 = arith.constant 0 : i32
    %c0_i32_1 = arith.constant 0 : i32
    return %c0_i32, %c0_i32_0 : i32, i32
  }
  func.func @transform_2(%arg0: i32) -> (i32, i32) {
    %c0_i32 = arith.constant 0 : i32
    %c0_i32_0 = arith.constant 0 : i32
    %c0_i32_1 = arith.constant 0 : i32
    return %c0_i32, %c0_i32_0 : i32, i32
  }
  func.func @transform_3(%arg0: i32) -> (i32, i32) {
    %c0_i32 = arith.constant 0 : i32
    %c0_i32_0 = arith.constant 0 : i32
    %c0_i32_1 = arith.constant 0 : i32
    return %c0_i32, %c0_i32_0 : i32, i32
  }
  func.func @transform_4(%arg0: i32) -> (i32, i32) {
    %c0_i32 = arith.constant 0 : i32
    %c0_i32_0 = arith.constant 0 : i32
    %c0_i32_1 = arith.constant 0 : i32
    return %c0_i32, %c0_i32_0 : i32, i32
  }
  func.func @transform_5(%arg0: i32) -> (i32, i32) {
    %c0_i32 = arith.constant 0 : i32
    %c0_i32_0 = arith.constant 0 : i32
    return %arg0, %c0_i32 : i32, i32
  }
  func.func @transform_6(%arg0: i32) -> (i32, i32) {
    %c0_i32 = arith.constant 0 : i32
    %c0_i32_0 = arith.constant 0 : i32
    return %arg0, %c0_i32 : i32, i32
  }
}

</mosaic_0001>

<llo_original>
// kernel: tpu_custom_call.1
$region0: #{tpu_custom_call.1}
  #allocation0 [shape = 'u32[]', space=smem, size = 0x4, offset = 0x4, fixed_abs, tag = 'smem constant byte address 0x4 - core index']
  #allocation1 [shape = 'u32[72,128]{1,0:T(1,128)}', space=vmem, size = 0x9000, scoped, tag = 'internal scratch']
  %s0 = inlined_call_operand.hbm [shape: f32[8,32], index: 0, kind: input, shape index: {}]
  %s1 = inlined_call_operand.hbm [shape: bf16[32,128], index: 1, kind: input, shape index: {}]
  %s2 = inlined_call_operand.vmem [shape: f32[1,128], index: 2, kind: input, shape index: {}]
  %s3 = inlined_call_operand.hbm [shape: bf16[128,256], index: 3, kind: input, shape index: {}]
  %s4 = inlined_call_operand.vmem [shape: f32[1,256], index: 4, kind: input, shape index: {}]
  %s5 = inlined_call_operand.hbm [shape: bf16[8,128], index: 5, kind: output, shape index: {0}]
  %s6 = inlined_call_operand.hbm [shape: bf16[8,128], index: 6, kind: output, shape index: {1}]
  %7 = xla_tuple %s5, %s6
  %s8 = sld [smem:[#allocation0]]
  $region50: #{tpu_custom_call.1} parent=0
    _
  %s10 = ssub.s32 1, %s8
  %s11 = scalar_select 0, %s10, %s8
  $region1: #{tpu_custom_call.1} parent=0
    #allocation2 [shape = 'u8[4096]{0}', space=vmem, size = 0x1000, scoped, tag = 'input window, operand 0, single buffered']
    #allocation3 [shape = 's32[1]{0}', space=sflag, size = 0x4, scoped, tag = 'scoped memory for tpu_custom_call.1']
    #allocation4 [shape = 's32[1]{0}', space=sflag, size = 0x4, scoped, tag = 'scoped memory for tpu_custom_call.1']
    #allocation5 [shape = 'u8[8192]{0}', space=vmem, size = 0x2000, scoped, tag = 'input window, operand 1, single buffered']
    #allocation6 [shape = 's32[1]{0}', space=sflag, size = 0x4, scoped, tag = 'scoped memory for tpu_custom_call.1']
    #allocation7 [shape = 'u8[65536]{0}', space=vmem, size = 0x10000, scoped, tag = 'input window, operand 3, single buffered']
    #allocation8 [shape = 'u8[2048]{0}', space=vmem, size = 0x800, scoped, tag = 'output window, operand 0, single buffered']
    #allocation9 [shape = 'u8[2048]{0}', space=vmem, size = 0x800, scoped, tag = 'output window, operand 1, single buffered']
    #allocation10 [shape = 's32[1]{0}', space=sflag, size = 0x4, scoped, tag = 'scoped memory for tpu_custom_call.1']
    %12 = vsyncpa [#allocation3], 0
    %13 = vsyncpa [#allocation6], 0
    %14 = vsyncpa [#allocation4], 0
    %15 = vsyncpa [#allocation10], 0
    // Predicated region
    $region2: #{tpu_custom_call.1} parent=1 // pred_check
      _
    $region3: #{tpu_custom_call.1} parent=1 // pred_check_branch
      %17 = sbr.rel (0) target = $region5
    $region4: #{tpu_custom_call.1} parent=1 // pred_region
      %19 = vsyncadd [#allocation3], 0
      %s21 = sshll.u32 %s0, 4
      %s22 = int_to_ptr.hbm [resolvable:$true] %s21
      %s23 = sshll.u32 [#allocation2], 4
      %s24 = int_to_ptr.vmem [resolvable:$true] %s23
      %26 = dma.hbm_to_vmem [thread:$0]  %s22, 128, %s24, [#allocation3]
    $region5: #{tpu_custom_call.1} parent=1 // pred_fallthru
      _
    // Predicated region
    $region6: #{tpu_custom_call.1} parent=1 // pred_check
      _
    $region7: #{tpu_custom_call.1} parent=1 // pred_check_branch
      %28 = sbr.rel (0) target = $region9
    $region8: #{tpu_custom_call.1} parent=1 // pred_region
      %30 = vsyncadd [#allocation6], 0
      %s31 = sshll.u32 %s1, 4
      %s32 = int_to_ptr.hbm [resolvable:$true] %s31
      %s33 = sshll.u32 [#allocation5], 4
      %s34 = int_to_ptr.vmem [resolvable:$true] %s33
      %39 = dma.hbm_to_vmem [thread:$0]  %s32, 256, %s34, [#allocation6], 64, 64, 4
    $region9: #{tpu_custom_call.1} parent=1 // pred_fallthru
      _
    // Predicated region
    $region10: #{tpu_custom_call.1} parent=1 // pred_check
      _
    $region11: #{tpu_custom_call.1} parent=1 // pred_check_branch
      %41 = sbr.rel (0) target = $region13
    $region12: #{tpu_custom_call.1} parent=1 // pred_region
      _
    $region13: #{tpu_custom_call.1} parent=1 // pred_fallthru
      _
    // Predicated region
    $region14: #{tpu_custom_call.1} parent=1 // pred_check
      _
    $region15: #{tpu_custom_call.1} parent=1 // pred_check_branch
      %43 = sbr.rel (0) target = $region17
    $region16: #{tpu_custom_call.1} parent=1 // pred_region
      %45 = vsyncadd [#allocation6], 0
      %s46 = sshll.u32 %s3, 4
      %s47 = int_to_ptr.hbm [resolvable:$true] %s46
      %s48 = sshll.u32 [#allocation7], 4
      %s49 = int_to_ptr.vmem [resolvable:$true] %s48
      %54 = dma.hbm_to_vmem [thread:$0]  %s47, 2048, %s49, [#allocation6], 128, 128, 8
    $region17: #{tpu_custom_call.1} parent=1 // pred_fallthru
      _
    // Predicated region
    $region18: #{tpu_custom_call.1} parent=1 // pred_check
      _
    $region19: #{tpu_custom_call.1} parent=1 // pred_check_branch
      %56 = sbr.rel (0) target = $region21
    $region20: #{tpu_custom_call.1} parent=1 // pred_region
      _
    $region21: #{tpu_custom_call.1} parent=1 // pred_fallthru
      _
    // Predicated region
    $region22: #{tpu_custom_call.1} parent=1 // pred_check
      _
    $region23: #{tpu_custom_call.1} parent=1 // pred_check_branch
      %58 = sbr.rel (0) target = $region25
    $region24: #{tpu_custom_call.1} parent=1 // pred_region
      %60 = dma.done [#allocation3], 128
    $region25: #{tpu_custom_call.1} parent=1 // pred_fallthru
      _
    // Predicated region
    $region26: #{tpu_custom_call.1} parent=1 // pred_check
      _
    $region27: #{tpu_custom_call.1} parent=1 // pred_check_branch
      %62 = sbr.rel (0) target = $region29
    $region28: #{tpu_custom_call.1} parent=1 // pred_region
      %64 = dma.done [#allocation6], 256
    $region29: #{tpu_custom_call.1} parent=1 // pred_fallthru
      _
    // Predicated region
    $region30: #{tpu_custom_call.1} parent=1 // pred_check
      _
    $region31: #{tpu_custom_call.1} parent=1 // pred_check_branch
      %66 = sbr.rel (0) target = $region33
    $region32: #{tpu_custom_call.1} parent=1 // pred_region
      %68 = dma.done [#allocation6], 2048
    $region33: #{tpu_custom_call.1} parent=1 // pred_fallthru
      _
    %v70 = vld [vmem:[#allocation2] sm:$0xff]
    %v71 = vpack.c.bf16 %v70, %v70
    %v72 = vld [vmem:[#allocation5] sm:$0xf]
    %v73 = vld [vmem:[#allocation5 + $0x4] sm:$0xf]
    %v74 = vld [vmem:[#allocation5 + $0x8] sm:$0xf]
    %v75 = vld [vmem:[#allocation5 + $0xc] sm:$0xf]
    %v76 = vld [vmem:[%s2] sm:$0x1]
    %v78 = vperm.slane %v76, 0
    %v84 = vunpack.c.l.b16 %v72
    %v85 = vunpack.c.l.b16 %v73
    %v86 = vunpack.c.l.b16 %v74
    %v87 = vunpack.c.l.b16 %v75
    %v88 = vpack.c.b16 %v85, %v84
    %v89 = vpack.c.b16 %v87, %v86
    %vm92 = vcmask 261120
    %v94 = vsel %vm92, %v71, 0
    %96 = vmatpush.bf16.msra.mxu0 0
    %97 = vmatpush.bf16.msra.mxu0 0
    %98 = vmatpush.bf16.msra.mxu0 0
    %99 = vmatpush.bf16.msra.mxu0 0
    %100 = vmatpush.bf16.msra.mxu0 0
    %101 = vmatpush.bf16.msra.mxu0 0
    %102 = vmatpush.bf16.msra.mxu0 %v89
    %103 = vmatpush.bf16.msra.mxu0 %v88
    %104 = vmatmul.bf16.gmra.mxu0 %v94
    %v105 = vpop.f32.mrf.mxu0
    %v106 = vadd.f32 %v78, %v105
    %v107 = vpop.f32.mrf.mxu0
    %108 = vdwg.mxu0
    %v109 = vmax.f32 %v106, 0.0
    %v110 = vpack.c.bf16 %v109, %v109
    %v111 = vld [vmem:[#allocation7] sm:$0xff]
    %v112 = vld [vmem:[#allocation7 + $0x8] sm:$0xff]
    %v113 = vld [vmem:[#allocation7 + $0x10] sm:$0xff]
    %v114 = vld [vmem:[#allocation7 + $0x18] sm:$0xff]
    %v115 = vld [vmem:[#allocation7 + $0x20] sm:$0xff]
    %v116 = vld [vmem:[#allocation7 + $0x28] sm:$0xff]
    %v117 = vld [vmem:[#allocation7 + $0x30] sm:$0xff]
    %v118 = vld [vmem:[#allocation7 + $0x38] sm:$0xff]
    %v119 = vld [vmem:[#allocation7 + $0x40] sm:$0xff]
    %v120 = vld [vmem:[#allocation7 + $0x48] sm:$0xff]
    %v121 = vld [vmem:[#allocation7 + $0x50] sm:$0xff]
    %v122 = vld [vmem:[#allocation7 + $0x58] sm:$0xff]
    %v123 = vld [vmem:[#allocation7 + $0x60] sm:$0xff]
    %v124 = vld [vmem:[#allocation7 + $0x68] sm:$0xff]
    %v125 = vld [vmem:[#allocation7 + $0x70] sm:$0xff]
    %v126 = vld [vmem:[#allocation7 + $0x78] sm:$0xff]
    %v127 = vld [vmem:[%s4] sm:$0x3]
    %v129 = vperm.slane %v127, 0
    %v130 = vperm.slane %v127, 1
    %v149 = vunpack.c.l.b16 %v111
    %v150 = vunpack.c.h.b16 %v111
    %v151 = vunpack.c.l.b16 %v112
    %v152 = vunpack.c.h.b16 %v112
    %v153 = vunpack.c.l.b16 %v113
    %v154 = vunpack.c.h.b16 %v113
    %v155 = vunpack.c.l.b16 %v114
    %v156 = vunpack.c.h.b16 %v114
    %v157 = vunpack.c.l.b16 %v115
    %v158 = vunpack.c.h.b16 %v115
    %v159 = vunpack.c.l.b16 %v116
    %v160 = vunpack.c.h.b16 %v116
    %v161 = vunpack.c.l.b16 %v117
    %v162 = vunpack.c.h.b16 %v117
    %v163 = vunpack.c.l.b16 %v118
    %v164 = vunpack.c.h.b16 %v118
    %v165 = vunpack.c.l.b16 %v119
    %v166 = vunpack.c.h.b16 %v119
    %v167 = vunpack.c.l.b16 %v120
    %v168 = vunpack.c.h.b16 %v120
    %v169 = vunpack.c.l.b16 %v121
    %v170 = vunpack.c.h.b16 %v121
    %v171 = vunpack.c.l.b16 %v122
    %v172 = vunpack.c.h.b16 %v122
    %v173 = vunpack.c.l.b16 %v123
    %v174 = vunpack.c.h.b16 %v123
    %v175 = vunpack.c.l.b16 %v124
    %v176 = vunpack.c.h.b16 %v124
    %v177 = vunpack.c.l.b16 %v125
    %v178 = vunpack.c.h.b16 %v125
    %v179 = vunpack.c.l.b16 %v126
    %v180 = vunpack.c.h.b16 %v126
    %v181 = vpack.c.b16 %v151, %v149
    %v182 = vpack.c.b16 %v152, %v150
    %v183 = vpack.c.b16 %v155, %v153
    %v184 = vpack.c.b16 %v156, %v154
    %v185 = vpack.c.b16 %v159, %v157
    %v186 = vpack.c.b16 %v160, %v158
    %v187 = vpack.c.b16 %v163, %v161
    %v188 = vpack.c.b16 %v164, %v162
    %v189 = vpack.c.b16 %v167, %v165
    %v190 = vpack.c.b16 %v168, %v166
    %v191 = vpack.c.b16 %v171, %v169
    %v192 = vpack.c.b16 %v172, %v170
    %v193 = vpack.c.b16 %v175, %v173
    %v194 = vpack.c.b16 %v176, %v174
    %v195 = vpack.c.b16 %v179, %v177
    %v196 = vpack.c.b16 %v180, %v178
    %213 = vmatpush.bf16.msra.mxu0 %v195
    %214 = vmatpush.bf16.msra.mxu0 %v193
    %215 = vmatpush.bf16.msra.mxu0 %v191
    %216 = vmatpush.bf16.msra.mxu0 %v189
    %217 = vmatpush.bf16.msra.mxu0 %v187
    %218 = vmatpush.bf16.msra.mxu0 %v185
    %219 = vmatpush.bf16.msra.mxu0 %v183
    %220 = vmatpush.bf16.msra.mxu0 %v181
    %221 = vmatmul.bf16.gmra.mxu0 %v110
    %v222 = vpop.f32.mrf.mxu0
    %v223 = vadd.f32 %v129, %v222
    %v224 = vpop.f32.mrf.mxu0
    %225 = vdwg.mxu0
    %226 = vmatpush.bf16.msra.mxu0 %v196
    %227 = vmatpush.bf16.msra.mxu0 %v194
    %228 = vmatpush.bf16.msra.mxu0 %v192
    %229 = vmatpush.bf16.msra.mxu0 %v190
    %230 = vmatpush.bf16.msra.mxu0 %v188
    %231 = vmatpush.bf16.msra.mxu0 %v186
    %232 = vmatpush.bf16.msra.mxu0 %v184
    %233 = vmatpush.bf16.msra.mxu0 %v182
    %234 = vmatmul.bf16.gmra.mxu0 %v110
    %v235 = vpop.f32.mrf.mxu0
    %v236 = vadd.f32 %v130, %v235
    %v237 = vpop.f32.mrf.mxu0
    %238 = vdwg.mxu0
    %v239 = vpack.c.bf16 %v223, %v223
    %240 = vst [vmem:[#allocation8] sm:$0xf] %v239
    %v241 = vmul.f32 %v236, 1.442695
    %v242 = vpow.pop %v241
    %v243 = vpack.c.bf16 %v242, %v242
    %244 = vst [vmem:[#allocation9] sm:$0xf] %v243
    // Predicated region
    $region34: #{tpu_custom_call.1} parent=1 // pred_check
      _
    $region35: #{tpu_custom_call.1} parent=1 // pred_check_branch
      %246 = sbr.rel (0) target = $region37
    $region36: #{tpu_custom_call.1} parent=1 // pred_region
      %248 = vsyncadd [#allocation4], 0
      %s250 = sshll.u32 [#allocation8], 4
      %s251 = int_to_ptr.vmem [resolvable:$true] %s250
      %s252 = sshll.u32 %s5, 4
      %s253 = int_to_ptr.hbm [resolvable:$true] %s252
      %255 = dma.vmem_to_hbm [thread:$0]  %s251, 64, %s253, [#allocation4]
    $region37: #{tpu_custom_call.1} parent=1 // pred_fallthru
      _
    // Predicated region
    $region38: #{tpu_custom_call.1} parent=1 // pred_check
      _
    $region39: #{tpu_custom_call.1} parent=1 // pred_check_branch
      %257 = sbr.rel (0) target = $region41
    $region40: #{tpu_custom_call.1} parent=1 // pred_region
      %259 = vsyncadd [#allocation10], 0
      %s261 = sshll.u32 [#allocation9], 4
      %s262 = int_to_ptr.vmem [resolvable:$true] %s261
      %s263 = sshll.u32 %s6, 4
      %s264 = int_to_ptr.hbm [resolvable:$true] %s263
      %266 = dma.vmem_to_hbm [thread:$0]  %s262, 64, %s264, [#allocation10]
    $region41: #{tpu_custom_call.1} parent=1 // pred_fallthru
      _
    // Predicated region
    $region42: #{tpu_custom_call.1} parent=1 // pred_check
      _
    $region43: #{tpu_custom_call.1} parent=1 // pred_check_branch
      %268 = sbr.rel (0) target = $region45
    $region44: #{tpu_custom_call.1} parent=1 // pred_region
      %270 = dma.done [#allocation4], 64
    $region45: #{tpu_custom_call.1} parent=1 // pred_fallthru
      _
    // Predicated region
    $region46: #{tpu_custom_call.1} parent=1 // pred_check
      _
    $region47: #{tpu_custom_call.1} parent=1 // pred_check_branch
      %272 = sbr.rel (0) target = $region49
    $region48: #{tpu_custom_call.1} parent=1 // pred_region
      %274 = dma.done [#allocation10], 64
    $region49: #{tpu_custom_call.1} parent=1 // pred_fallthru
      _
    %275 = vsyncpa [#allocation3], 1
    %276 = vsyncpa [#allocation6], 1
    %277 = vsyncpa [#allocation4], 1
    %278 = vsyncpa [#allocation10], 1

</llo_original>
